<compile_context>
chip_gen: v5e
topology: v5e:2x2
jax: 0.10.0
libtpu: 0.0.40
codegen_flags: <defaults>
</compile_context>

<pallas_src>
import math
import functools

import jax
import jax.numpy as jnp
from jax.experimental import pallas as pl
from jax.experimental.pallas import tpu as pltpu

_NEG_INF = -1e30  # large finite negative: avoids NaNs from exp(-inf - (-inf))
_VMEM_LIMIT_BYTES = 64 * 1024 * 1024  # headroom above the 16/32 MiB scoped defaults


# --------------------------------------------------------------------------- #
# Fused q/k/v projection: one matmul over the concatenated weight
#   - "dense" outputs  -> (B, T, H*d_k)  lane-dense single-block store (used for q)
#   - "heads" outputs  -> (B, H, T, d_k) head-first, MXU/cache-ready (used for k, v)
# --------------------------------------------------------------------------- #
def _qkv_proj_kernel(x_ref, w_ref, b_ref, *o_refs):
    # Single MXU matmul over the fused weight; outputs are carved out of y by
    # column offset.  3-D output refs get one wide lane-dense store; 4-D output
    # refs get per-head (head-first) stores.
    y = jnp.dot(x_ref[0], w_ref[...], preferred_element_type=jnp.float32) + b_ref[...]
    off = 0
    for o_ref in o_refs:
        if len(o_ref.shape) == 3:                      # (1, tm, width): lane-dense
            width = o_ref.shape[-1]
            o_ref[0] = y[:, off:off + width].astype(o_ref.dtype)
            off += width
        else:                                          # (1, H, tm, d_k): head-first
            _, n_heads, _, d_k = o_ref.shape
            for h in range(n_heads):
                o_ref[0, h] = y[:, off:off + d_k].astype(o_ref.dtype)
                off += d_k


def fused_projection(x, w, b, layouts, d_k, *, row_tile=256):
    """x: (B, T, F); w: (F, sum(H_i)*d_k); b: (sum(H_i)*d_k,).

    `layouts` is a tuple of ("dense"|"heads", n_heads) describing each output:
      "dense" -> (B, T, n_heads*d_k); "heads" -> (B, n_heads, T, d_k).
    The activation is read from HBM exactly once (one pallas_call, fused weight).
    """
    B, T, F_in = x.shape
    Dtot = w.shape[1]
    assert sum(h for _, h in layouts) * d_k == Dtot
    tm = T if T <= row_tile else row_tile
    grid = (B, pl.cdiv(T, tm))

    out_shape, out_specs = [], []
    for kind, Hh in layouts:
        if kind == "dense":
            out_shape.append(jax.ShapeDtypeStruct((B, T, Hh * d_k), x.dtype))
            out_specs.append(pl.BlockSpec((1, tm, Hh * d_k), lambda bi, ti: (bi, ti, 0)))
        else:
            out_shape.append(jax.ShapeDtypeStruct((B, Hh, T, d_k), x.dtype))
            out_specs.append(pl.BlockSpec((1, Hh, tm, d_k), lambda bi, ti: (bi, 0, ti, 0)))

    outs = pl.pallas_call(
        _qkv_proj_kernel,
        out_shape=tuple(out_shape),
        grid=grid,
        in_specs=[
            pl.BlockSpec((1, tm, F_in), lambda bi, ti: (bi, ti, 0)),   # streamed row tile
            pl.BlockSpec((F_in, Dtot), lambda bi, ti: (0, 0)),         # weight VMEM-resident
            pl.BlockSpec((1, Dtot), lambda bi, ti: (0, 0)),
        ],
        out_specs=tuple(out_specs),
        compiler_params=pltpu.CompilerParams(
            dimension_semantics=("parallel", "parallel"),
            vmem_limit_bytes=_VMEM_LIMIT_BYTES),
    )(x, w, b.reshape(1, Dtot))
    return tuple(outs) if isinstance(outs, (list, tuple)) else (outs,)


# --------------------------------------------------------------------------- #
# Flash attention + fused output projection.
#   grid = (batch, q-tile, kv-tile["arbitrary"]), ALL heads per grid step.
#   q arrives lane-dense (B, T1, H*d_k); its head split is hoisted to ki == 0.
#   k/v arrive head-first (B, H, T2, d_k), directly MXU-ready.
#   At ki == last the normalized context is pushed through W_o per head
#   (leading-dim slices only, no relayout) and stored as a lane-dense (tq, F) block.
# --------------------------------------------------------------------------- #
def _flash_out_kernel(q_ref, k_ref, v_ref, mask_ref, wo_ref, bo_ref, o_ref,
                      q_sc, m_sc, l_sc, acc_sc, *, t2, kv_tile, d_k):
    ki = pl.program_id(2)

    @pl.when(ki == 0)
    def _():
        # Split q into heads ONCE per q tile (q block is constant across ki).
        n_heads = q_sc.shape[0]
        qt = q_ref[0]                                    # (tq, H*d_k), scale pre-folded
        for h in range(n_heads):
            q_sc[h] = qt[:, h * d_k:(h + 1) * d_k]
        m_sc[...] = jnp.full_like(m_sc, _NEG_INF)
        l_sc[...] = jnp.zeros_like(l_sc)
        acc_sc[...] = jnp.zeros_like(acc_sc)

    q = q_sc[...]           # (H, tq, d_k)  activation dtype -> bf16-friendly MXU operands
    k = k_ref[0]            # (H, tk, d_k)
    v = v_ref[0]            # (H, tk, d_k)

    # scores[h, q, kv] = sum_d q*k : contracts last dims, no k.T, f32 accumulate.
    s = jnp.einsum("hqd,hkd->hqk", q, k,
                   preferred_element_type=jnp.float32)          # (H, tq, tk)

    invalid = mask_ref[0] == 0                                  # (Tm, tk), Tm in {1, tq}
    if t2 % kv_tile:                                            # guard padded kv tail
        col = ki * kv_tile + jax.lax.broadcasted_iota(jnp.int32, invalid.shape, 1)
        invalid = jnp.logical_or(invalid, col >= t2)
    invalid = invalid[None]                                     # broadcasts over (H, tq, tk)

    s = jnp.where(invalid, _NEG_INF, s)

    m_prev = m_sc[...]
    m_new = jnp.maximum(m_prev, jnp.max(s, axis=-1, keepdims=True))   # (H, tq, 1)
    alpha = jnp.exp(m_prev - m_new)
    # TODO(synk): on v6e/v7x a bf16 exp here roughly doubles EUP throughput; kept f32
    # for v5e safety / numerics.
    p = jnp.exp(s - m_new)
    p = jnp.where(invalid, 0.0, p)                              # torch: masked_fill(mask, 0.0)

    l_sc[...] = alpha * l_sc[...] + jnp.sum(p, axis=-1, keepdims=True)
    acc_sc[...] = alpha * acc_sc[...] + jnp.einsum(
        "hqk,hkd->hqd", p.astype(v.dtype), v, preferred_element_type=jnp.float32)
    m_sc[...] = m_new

    @pl.when(ki == pl.num_programs(2) - 1)
    def _():
        l = l_sc[...]
        # exact reciprocal: runs once per q tile, essentially free.
        # fully-masked rows (l == 0) -> exact 0 context, like torch.
        inv_l = jnp.where(l > 0.0, pl.reciprocal(l, approx=False), 0.0)
        ctx = (acc_sc[...] * inv_l).astype(q_ref.dtype)          # (H, tq, d_k)
        n_heads = ctx.shape[0]
        # Fused output projection: per-head accumulating dots (leading-dim slices only,
        # no relayout).  Amortized once per q tile over the whole kv loop.
        out = jnp.dot(ctx[0], wo_ref[0], preferred_element_type=jnp.float32)
        for h in range(1, n_heads):
            out = out + jnp.dot(ctx[h], wo_ref[h], preferred_element_type=jnp.float32)
        o_ref[0] = (out + bo_ref[...]).astype(o_ref.dtype)       # lane-dense (tq, F)


def attention_output(q, k, v, mask, wo_h, bo, *, q_tile=256, kv_tile=256):
    """q: (B, T1, H*d_k) lane-dense (scale pre-folded into W_q);
    k, v: (B, H, T2, d_k) head-first; mask: (B, 1, T2) or (B, T1, T2);
    wo_h: (H, d_k, F); bo: (F,).  Returns (B, T1, F)."""
    B, T1, D = q.shape
    _, H, T2, d_k = k.shape
    F = wo_h.shape[-1]
    Tm = mask.shape[1]
    tq = T1 if T1 <= q_tile else q_tile
    tk = T2 if T2 <= kv_tile else kv_tile
    grid = (B, pl.cdiv(T1, tq), pl.cdiv(T2, tk))

    if Tm == 1:   # padding-style (B, 1, T2) mask — tiny per-step tile
        mask_spec = pl.BlockSpec((1, 1, tk), lambda b, qi, ki: (b, 0, ki))
    else:         # full (B, T1, T2) mask
        mask_spec = pl.BlockSpec((1, tq, tk), lambda b, qi, ki: (b, qi, ki))

    kernel = functools.partial(_flash_out_kernel, t2=T2, kv_tile=tk, d_k=d_k)
    return pl.pallas_call(
        kernel,
        out_shape=jax.ShapeDtypeStruct((B, T1, F), q.dtype),
        grid=grid,
        in_specs=[
            pl.BlockSpec((1, tq, D), lambda b, qi, ki: (b, qi, 0)),        # q (lane-dense)
            pl.BlockSpec((1, H, tk, d_k), lambda b, qi, ki: (b, 0, ki, 0)),  # k
            pl.BlockSpec((1, H, tk, d_k), lambda b, qi, ki: (b, 0, ki, 0)),  # v
            mask_spec,
            pl.BlockSpec((H, d_k, F), lambda b, qi, ki: (0, 0, 0)),        # W_o resident
            pl.BlockSpec((1, F), lambda b, qi, ki: (0, 0)),                # b_o
        ],
        out_specs=pl.BlockSpec((1, tq, F), lambda b, qi, ki: (b, qi, 0)),
        scratch_shapes=[
            pltpu.VMEM((H, tq, d_k), q.dtype),       # q split into heads (per q tile)
            pltpu.VMEM((H, tq, 1), jnp.float32),     # running max
            pltpu.VMEM((H, tq, 1), jnp.float32),     # running denominator
            pltpu.VMEM((H, tq, d_k), jnp.float32),   # running numerator
        ],
        compiler_params=pltpu.CompilerParams(
            dimension_semantics=("parallel", "parallel", "arbitrary"),
            vmem_limit_bytes=_VMEM_LIMIT_BYTES),
    )(q, k, v, mask.astype(jnp.int8), wo_h, bo.reshape(1, F))


# --------------------------------------------------------------------------- #
# Module parameters + forward (MHSA case: n_kv_head=None, head_dim=None)
# --------------------------------------------------------------------------- #
def init_params(key, n_feat, n_head):
    """Deterministic nn.Linear-style init. Weights stored as (in, out)."""
    d_k = n_feat // n_head
    scale = 1.0 / math.sqrt(d_k)

    def linear_init(kw, kb, fan_in, fan_out):
        bound = 1.0 / math.sqrt(fan_in)
        w = jax.random.uniform(kw, (fan_in, fan_out), jnp.float32, -bound, bound)
        b = jax.random.uniform(kb, (fan_out,), jnp.float32, -bound, bound)
        return w, b

    ks = jax.random.split(key, 8)
    wq, bq = linear_init(ks[0], ks[1], n_feat, n_feat)
    wk, bk = linear_init(ks[2], ks[3], n_feat, n_feat)
    wv, bv = linear_init(ks[4], ks[5], n_feat, n_feat)
    wo, bo = linear_init(ks[6], ks[7], n_feat, n_feat)

    # 1/sqrt(d_k) folded into the q projection (zero-cost; deleted from the kernel).
    wq_s, bq_s = wq * scale, bq * scale
    return dict(
        wq=wq, bq=bq, wk=wk, bk=bk, wv=wv, bv=bv, wo=wo, bo=bo,
        wq_s=wq_s, bq_s=bq_s,
        # fused / pre-reshaped copies so the forward pass does no weight plumbing at runtime
        w_qkv_s=jnp.concatenate([wq_s, wk, wv], axis=1),
        b_qkv_s=jnp.concatenate([bq_s, bk, bv], axis=0),
        w_kv=jnp.concatenate([wk, wv], axis=1),
        b_kv=jnp.concatenate([bk, bv], axis=0),
        wo_h=wo.reshape(n_head, d_k, n_feat),
    )


def mha_forward(params, query, key, value, mask, n_head):
    """Equivalent of MultiHeadedAttention.forward (eval mode, empty cache, use_sdpa=False).

    query: (B, T1, F); key/value: (B, T2, F); mask: (B, 1, T2) or (B, T1, T2) bool.
    Returns (output (B, T1, F), new_cache=(k, v) with shape (B, H, T2, d_k)).
    """
    B, T1, F = query.shape
    T2 = key.shape[1]
    H = n_head
    d_k = F // H

    if mask is None or mask.shape[-1] == 0:     # torch's "fake mask" -> no masking
        mask = jnp.ones((B, 1, T2), dtype=bool)

    # Projections: each source activation is read from HBM exactly once.
    #   q -> lane-dense (B, T1, H*d_k); k/v -> head-first (B, H, T2, d_k) (cache layout).
    if key is query and value is query:                      # self-attention: fused qkv
        q, k, v = fused_projection(
            query, params["w_qkv_s"], params["b_qkv_s"],
            (("dense", H), ("heads", H), ("heads", H)), d_k)
    elif key is value:                                       # cross-attention: fused kv
        (q,) = fused_projection(query, params["wq_s"], params["bq_s"], (("dense", H),), d_k)
        k, v = fused_projection(key, params["w_kv"], params["b_kv"],
                                (("heads", H), ("heads", H)), d_k)
    else:
        (q,) = fused_projection(query, params["wq_s"], params["bq_s"], (("dense", H),), d_k)
        (k,) = fused_projection(key, params["wk"], params["bk"], (("heads", H),), d_k)
        (v,) = fused_projection(value, params["wv"], params["bv"], (("heads", H),), d_k)

    # eval mode, empty cache -> new_cache = (k, v); already in torch's (B, H, T2, d_k) layout.
    # TODO(synk): kv-cache concat and GQA/MQA head-repeat are plain-JAX glue, not exercised here.
    new_cache = (k, v)

    # Flash attention with the output projection fused into its finalize.
    out = attention_output(q, k, v, mask, params["wo_h"], params["bo"])  # (B, T1, F)
    # dropout_rate = 0.0 (eval) -> dropout is identity
    return out, new_cache


# --------------------------------------------------------------------------- #
# Pure-JAX reference (mirrors the PyTorch math) for a correctness check
# --------------------------------------------------------------------------- #
def mha_reference(params, query, key, value, mask, n_head):
    B, T1, F = query.shape
    T2 = key.shape[1]
    H = n_head
    d_k = F // H

    q = (query @ params["wq"] + params["bq"]).reshape(B, T1, H, d_k).transpose(0, 2, 1, 3)
    k = (key @ params["wk"] + params["bk"]).reshape(B, T2, H, d_k).transpose(0, 2, 1, 3)
    v = (value @ params["wv"] + params["bv"]).reshape(B, T2, H, d_k).transpose(0, 2, 1, 3)

    scores = jnp.einsum("bhtd,bhsd->bhts", q, k) / math.sqrt(d_k)
    m = (mask[:, None, :, :] == 0)  # (B, 1, Tm, T2)
    scores = jnp.where(m, -jnp.inf, scores)
    attn = jax.nn.softmax(scores.astype(jnp.float32), axis=-1)
    attn = jnp.where(m, 0.0, attn)
    x = jnp.einsum("bhts,bhsd->bhtd", attn, v)
    x = x.transpose(0, 2, 1, 3).reshape(B, T1, H * d_k)
    return x @ params["wo"] + params["bo"]


# --------------------------------------------------------------------------- #
if __name__ == "__main__":
    B, T1, T2, n_feat, n_head = 2, 8, 12, 32, 4

    root = jax.random.PRNGKey(0)
    kp, kx, km = jax.random.split(root, 3)
    params = init_params(kp, n_feat, n_head)

    x = jax.random.normal(kx, (B, T1, n_feat), jnp.float32)

    # --- case 1: encoder-style self-attention, (B, T1, T1) mask (causal + key padding) ---
    causal = jnp.tril(jnp.ones((T1, T1), dtype=bool))
    pad = jnp.ones((B, 1, T1), dtype=bool).at[1, 0, -2:].set(False)
    mask_self = jnp.logical_and(causal[None, :, :], pad)

    out1, (k_cache, v_cache) = mha_forward(params, x, x, x, mask_self, n_head)
    out1 = jax.block_until_ready(out1)
    ref1 = mha_reference(params, x, x, x, mask_self, n_head)
    assert out1.shape == (B, T1, n_feat)
    assert k_cache.shape == (B, n_head, T1, n_feat // n_head)
    assert v_cache.shape == (B, n_head, T1, n_feat // n_head)
    err1 = float(jnp.max(jnp.abs(out1 - ref1)))
    assert err1 < 1e-2, f"self-attention mismatch vs reference: max abs err {err1}"

    # --- case 2: cross-attention, (B, 1, T2) padding mask ---
    mem = jax.random.normal(km, (B, T2, n_feat), jnp.float32)
    mask_cross = jnp.ones((B, 1, T2), dtype=bool).at[1, 0, -3:].set(False)

    out2, (k_cache2, v_cache2) = mha_forward(params, x, mem, mem, mask_cross, n_head)
    out2 = jax.block_until_ready(out2)
    ref2 = mha_reference(params, x, mem, mem, mask_cross, n_head)
    assert out2.shape == (B, T1, n_feat)
    assert k_cache2.shape == (B, n_head, T2, n_feat // n_head)
    err2 = float(jnp.max(jnp.abs(out2 - ref2)))
    assert err2 < 1e-2, f"cross-attention mismatch vs reference: max abs err {err2}"

    print("KERNEL_OK")
</pallas_src>

<mosaic_0001>
module attributes {stable_mosaic.version = 11 : i64} {
  func.func @_qkv_proj_kernel(%arg0: i32, %arg1: i32, %arg2: memref<1x8x32xf32, #tpu.memory_space<vmem>>, %arg3: memref<32x96xf32, #tpu.memory_space<vmem>>, %arg4: memref<1x96xf32, #tpu.memory_space<vmem>>, %arg5: memref<1x8x32xf32, #tpu.memory_space<vmem>>, %arg6: memref<1x4x8x8xf32, #tpu.memory_space<vmem>>, %arg7: memref<1x4x8x8xf32, #tpu.memory_space<vmem>>) attributes {dimension_semantics = [#tpu.dimension_semantics<parallel>, #tpu.dimension_semantics<parallel>], iteration_bounds = array<i64: 2, 1>, scalar_prefetch = 0 : i64, scratch_operands = 0 : i64, tpu.core_type = #tpu.core_type<tc>, window_params = [{transform_indices = @transform_0, window_bounds = array<i64: 1, 8, 32>}, {pipeline_mode = #tpu.pipeline_mode<synchronous>, transform_indices = @transform_1, window_bounds = array<i64: 32, 96>}, {pipeline_mode = #tpu.pipeline_mode<synchronous>, transform_indices = @transform_2, window_bounds = array<i64: 1, 96>}, {transform_indices = @transform_3, window_bounds = array<i64: 1, 8, 32>}, {transform_indices = @transform_4, window_bounds = array<i64: 1, 4, 8, 8>}, {transform_indices = @transform_5, window_bounds = array<i64: 1, 4, 8, 8>}]} {
    %c0 = arith.constant 0 : index
    %c0_0 = arith.constant 0 : index
    %c0_1 = arith.constant 0 : index
    %0 = vector.load %arg2[%c0, %c0_0, %c0_1] : memref<1x8x32xf32, #tpu.memory_space<vmem>>, vector<1x8x32xf32>
    %1 = vector.shape_cast %0 : vector<1x8x32xf32> to vector<8x32xf32>
    %c0_2 = arith.constant 0 : index
    %c0_3 = arith.constant 0 : index
    %2 = vector.load %arg3[%c0_2, %c0_3] : memref<32x96xf32, #tpu.memory_space<vmem>>, vector<32x96xf32>
    %cst = arith.constant dense<0.000000e+00> : vector<8x96xf32>
    %3 = tpu.matmul %1, %2, %cst {dimension_numbers = #tpu.dot_dimension_numbers<[1], [0], [0], [1], [0, 0, 1, 1], [], []>} : vector<8x32xf32>, vector<32x96xf32>, vector<8x96xf32> -> vector<8x96xf32>
    %c0_4 = arith.constant 0 : index
    %c0_5 = arith.constant 0 : index
    %4 = vector.load %arg4[%c0_4, %c0_5] : memref<1x96xf32, #tpu.memory_space<vmem>>, vector<1x96xf32>
    %5 = vector.broadcast %4 : vector<1x96xf32> to vector<8x96xf32>
    %6 = arith.addf %3, %5 : vector<8x96xf32>
    %7 = vector.extract_strided_slice %6 {offsets = [0, 0], sizes = [8, 32], strides = [1, 1]} : vector<8x96xf32> to vector<8x32xf32>
    %c0_6 = arith.constant 0 : index
    %c0_7 = arith.constant 0 : index
    %c0_8 = arith.constant 0 : index
    %8 = vector.load %arg5[%c0_6, %c0_7, %c0_8] : memref<1x8x32xf32, #tpu.memory_space<vmem>>, vector<1x8x32xf32>
    %9 = vector.shape_cast %8 : vector<1x8x32xf32> to vector<8x32xf32>
    %10 = vector.shape_cast %7 : vector<8x32xf32> to vector<1x8x32xf32>
    tpu.vector_store %arg5[%c0_6, %c0_7, %c0_8], %10 {strides = array<i32>} : memref<1x8x32xf32, #tpu.memory_space<vmem>>, vector<1x8x32xf32>,
    %11 = vector.extract_strided_slice %6 {offsets = [0, 32], sizes = [8, 8], strides = [1, 1]} : vector<8x96xf32> to vector<8x8xf32>
    %c0_9 = arith.constant 0 : index
    %c0_10 = arith.constant 0 : index
    %c0_11 = arith.constant 0 : index
    %c0_12 = arith.constant 0 : index
    %12 = vector.load %arg6[%c0_9, %c0_10, %c0_11, %c0_12] : memref<1x4x8x8xf32, #tpu.memory_space<vmem>>, vector<1x1x8x8xf32>
    %13 = vector.shape_cast %12 : vector<1x1x8x8xf32> to vector<8x8xf32>
    %14 = vector.shape_cast %11 : vector<8x8xf32> to vector<1x1x8x8xf32>
    tpu.vector_store %arg6[%c0_9, %c0_10, %c0_11, %c0_12], %14 {strides = array<i32>} : memref<1x4x8x8xf32, #tpu.memory_space<vmem>>, vector<1x1x8x8xf32>,
    %15 = vector.extract_strided_slice %6 {offsets = [0, 40], sizes = [8, 8], strides = [1, 1]} : vector<8x96xf32> to vector<8x8xf32>
    %c0_13 = arith.constant 0 : index
    %c1 = arith.constant 1 : index
    %c0_14 = arith.constant 0 : index
    %c0_15 = arith.constant 0 : index
    %16 = vector.load %arg6[%c0_13, %c1, %c0_14, %c0_15] : memref<1x4x8x8xf32, #tpu.memory_space<vmem>>, vector<1x1x8x8xf32>
    %17 = vector.shape_cast %16 : vector<1x1x8x8xf32> to vector<8x8xf32>
    %18 = vector.shape_cast %15 : vector<8x8xf32> to vector<1x1x8x8xf32>
    tpu.vector_store %arg6[%c0_13, %c1, %c0_14, %c0_15], %18 {strides = array<i32>} : memref<1x4x8x8xf32, #tpu.memory_space<vmem>>, vector<1x1x8x8xf32>,
    %19 = vector.extract_strided_slice %6 {offsets = [0, 48], sizes = [8, 8], strides = [1, 1]} : vector<8x96xf32> to vector<8x8xf32>
    %c0_16 = arith.constant 0 : index
    %c2 = arith.constant 2 : index
    %c0_17 = arith.constant 0 : index
    %c0_18 = arith.constant 0 : index
    %20 = vector.load %arg6[%c0_16, %c2, %c0_17, %c0_18] : memref<1x4x8x8xf32, #tpu.memory_space<vmem>>, vector<1x1x8x8xf32>
    %21 = vector.shape_cast %20 : vector<1x1x8x8xf32> to vector<8x8xf32>
    %22 = vector.shape_cast %19 : vector<8x8xf32> to vector<1x1x8x8xf32>
    tpu.vector_store %arg6[%c0_16, %c2, %c0_17, %c0_18], %22 {strides = array<i32>} : memref<1x4x8x8xf32, #tpu.memory_space<vmem>>, vector<1x1x8x8xf32>,
    %23 = vector.extract_strided_slice %6 {offsets = [0, 56], sizes = [8, 8], strides = [1, 1]} : vector<8x96xf32> to vector<8x8xf32>
    %c0_19 = arith.constant 0 : index
    %c3 = arith.constant 3 : index
    %c0_20 = arith.constant 0 : index
    %c0_21 = arith.constant 0 : index
    %24 = vector.load %arg6[%c0_19, %c3, %c0_20, %c0_21] : memref<1x4x8x8xf32, #tpu.memory_space<vmem>>, vector<1x1x8x8xf32>
    %25 = vector.shape_cast %24 : vector<1x1x8x8xf32> to vector<8x8xf32>
    %26 = vector.shape_cast %23 : vector<8x8xf32> to vector<1x1x8x8xf32>
    tpu.vector_store %arg6[%c0_19, %c3, %c0_20, %c0_21], %26 {strides = array<i32>} : memref<1x4x8x8xf32, #tpu.memory_space<vmem>>, vector<1x1x8x8xf32>,
    %27 = vector.extract_strided_slice %6 {offsets = [0, 64], sizes = [8, 8], strides = [1, 1]} : vector<8x96xf32> to vector<8x8xf32>
    %c0_22 = arith.constant 0 : index
    %c0_23 = arith.constant 0 : index
    %c0_24 = arith.constant 0 : index
    %c0_25 = arith.constant 0 : index
    %28 = vector.load %arg7[%c0_22, %c0_23, %c0_24, %c0_25] : memref<1x4x8x8xf32, #tpu.memory_space<vmem>>, vector<1x1x8x8xf32>
    %29 = vector.shape_cast %28 : vector<1x1x8x8xf32> to vector<8x8xf32>
    %30 = vector.shape_cast %27 : vector<8x8xf32> to vector<1x1x8x8xf32>
    tpu.vector_store %arg7[%c0_22, %c0_23, %c0_24, %c0_25], %30 {strides = array<i32>} : memref<1x4x8x8xf32, #tpu.memory_space<vmem>>, vector<1x1x8x8xf32>,
    %31 = vector.extract_strided_slice %6 {offsets = [0, 72], sizes = [8, 8], strides = [1, 1]} : vector<8x96xf32> to vector<8x8xf32>
    %c0_26 = arith.constant 0 : index
    %c1_27 = arith.constant 1 : index
    %c0_28 = arith.constant 0 : index
    %c0_29 = arith.constant 0 : index
    %32 = vector.load %arg7[%c0_26, %c1_27, %c0_28, %c0_29] : memref<1x4x8x8xf32, #tpu.memory_space<vmem>>, vector<1x1x8x8xf32>
    %33 = vector.shape_cast %32 : vector<1x1x8x8xf32> to vector<8x8xf32>
    %34 = vector.shape_cast %31 : vector<8x8xf32> to vector<1x1x8x8xf32>
    tpu.vector_store %arg7[%c0_26, %c1_27, %c0_28, %c0_29], %34 {strides = array<i32>} : memref<1x4x8x8xf32, #tpu.memory_space<vmem>>, vector<1x1x8x8xf32>,
    %35 = vector.extract_strided_slice %6 {offsets = [0, 80], sizes = [8, 8], strides = [1, 1]} : vector<8x96xf32> to vector<8x8xf32>
    %c0_30 = arith.constant 0 : index
    %c2_31 = arith.constant 2 : index
    %c0_32 = arith.constant 0 : index
    %c0_33 = arith.constant 0 : index
    %36 = vector.load %arg7[%c0_30, %c2_31, %c0_32, %c0_33] : memref<1x4x8x8xf32, #tpu.memory_space<vmem>>, vector<1x1x8x8xf32>
    %37 = vector.shape_cast %36 : vector<1x1x8x8xf32> to vector<8x8xf32>
    %38 = vector.shape_cast %35 : vector<8x8xf32> to vector<1x1x8x8xf32>
    tpu.vector_store %arg7[%c0_30, %c2_31, %c0_32, %c0_33], %38 {strides = array<i32>} : memref<1x4x8x8xf32, #tpu.memory_space<vmem>>, vector<1x1x8x8xf32>,
    %39 = vector.extract_strided_slice %6 {offsets = [0, 88], sizes = [8, 8], strides = [1, 1]} : vector<8x96xf32> to vector<8x8xf32>
    %c0_34 = arith.constant 0 : index
    %c3_35 = arith.constant 3 : index
    %c0_36 = arith.constant 0 : index
    %c0_37 = arith.constant 0 : index
    %40 = vector.load %arg7[%c0_34, %c3_35, %c0_36, %c0_37] : memref<1x4x8x8xf32, #tpu.memory_space<vmem>>, vector<1x1x8x8xf32>
    %41 = vector.shape_cast %40 : vector<1x1x8x8xf32> to vector<8x8xf32>
    %42 = vector.shape_cast %39 : vector<8x8xf32> to vector<1x1x8x8xf32>
    tpu.vector_store %arg7[%c0_34, %c3_35, %c0_36, %c0_37], %42 {strides = array<i32>} : memref<1x4x8x8xf32, #tpu.memory_space<vmem>>, vector<1x1x8x8xf32>,
    return
  }
  func.func @transform_0(%arg0: i32, %arg1: i32) -> (i32, i32, i32) {
    %c0_i32 = arith.constant 0 : i32
    %c0_i32_0 = arith.constant 0 : i32
    return %arg0, %arg1, %c0_i32 : i32, i32, i32
  }
  func.func @transform_1(%arg0: i32, %arg1: i32) -> (i32, i32) {
    %c0_i32 = arith.constant 0 : i32
    %c0_i32_0 = arith.constant 0 : i32
    %c0_i32_1 = arith.constant 0 : i32
    return %c0_i32, %c0_i32_0 : i32, i32
  }
  func.func @transform_2(%arg0: i32, %arg1: i32) -> (i32, i32) {
    %c0_i32 = arith.constant 0 : i32
    %c0_i32_0 = arith.constant 0 : i32
    %c0_i32_1 = arith.constant 0 : i32
    return %c0_i32, %c0_i32_0 : i32, i32
  }
  func.func @transform_3(%arg0: i32, %arg1: i32) -> (i32, i32, i32) {
    %c0_i32 = arith.constant 0 : i32
    %c0_i32_0 = arith.constant 0 : i32
    return %arg0, %arg1, %c0_i32 : i32, i32, i32
  }
  func.func @transform_4(%arg0: i32, %arg1: i32) -> (i32, i32, i32, i32) {
    %c0_i32 = arith.constant 0 : i32
    %c0_i32_0 = arith.constant 0 : i32
    %c0_i32_1 = arith.constant 0 : i32
    return %arg0, %c0_i32, %arg1, %c0_i32_0 : i32, i32, i32, i32
  }
  func.func @transform_5(%arg0: i32, %arg1: i32) -> (i32, i32, i32, i32) {
    %c0_i32 = arith.constant 0 : i32
    %c0_i32_0 = arith.constant 0 : i32
    %c0_i32_1 = arith.constant 0 : i32
    return %arg0, %c0_i32, %arg1, %c0_i32_0 : i32, i32, i32, i32
  }
}

</mosaic_0001>

<llo_original>
// kernel: tpu_custom_call.1
$region0: #{tpu_custom_call.1}
  #allocation0 [shape = 'u32[]', space=smem, size = 0x4, offset = 0x4, fixed_abs, tag = 'smem constant byte address 0x4 - core index']
  #allocation1 [shape = 'u32[72,128]{1,0:T(1,128)}', space=vmem, size = 0x9000, scoped, tag = 'internal scratch']
  %s0 = inlined_call_operand.hbm [shape: f32[2,8,32], index: 0, kind: input, shape index: {}]
  %s1 = inlined_call_operand.hbm [shape: f32[32,96], index: 1, kind: input, shape index: {}]
  %s2 = inlined_call_operand.vmem [shape: f32[1,96], index: 2, kind: input, shape index: {}]
  %s3 = inlined_call_operand.hbm [shape: f32[2,8,32], index: 3, kind: output, shape index: {0}]
  %s4 = inlined_call_operand.hbm [shape: f32[2,4,8,8], index: 4, kind: output, shape index: {1}]
  %s5 = inlined_call_operand.hbm [shape: f32[2,4,8,8], index: 5, kind: output, shape index: {2}]
  %6 = xla_tuple %s3, %s4, %s5
  %s7 = sld [smem:[#allocation0]]
  $region69: #{tpu_custom_call.1} parent=0
    _
  %s9 = ssub.s32 1, %s7
  %s10 = scalar_select 0, %s9, %s7
  $region1: #{tpu_custom_call.1} parent=0
    #allocation2 [shape = 'u8[8192]{0}', space=vmem, size = 0x2000, scoped, tag = 'input window, operand 0']
    #allocation3 [shape = 's32[2]{0}', space=sflag, size = 0x8, scoped, tag = 'scoped memory for tpu_custom_call.1']
    #allocation4 [shape = 's32[2]{0}', space=sflag, size = 0x8, scoped, tag = 'scoped memory for tpu_custom_call.1']
    #allocation5 [shape = 'u8[16384]{0}', space=vmem, size = 0x4000, scoped, tag = 'input window, operand 1, single buffered']
    #allocation6 [shape = 's32[1]{0}', space=sflag, size = 0x4, scoped, tag = 'scoped memory for tpu_custom_call.1']
    #allocation7 [shape = 'u8[8192]{0}', space=vmem, size = 0x2000, scoped, tag = 'output window, operand 0']
    #allocation8 [shape = 'u8[32768]{0}', space=vmem, size = 0x8000, scoped, tag = 'output window, operand 1']
    #allocation9 [shape = 's32[2]{0}', space=sflag, size = 0x8, scoped, tag = 'scoped memory for tpu_custom_call.1']
    #allocation10 [shape = 'u8[32768]{0}', space=vmem, size = 0x8000, scoped, tag = 'output window, operand 2']
    %11 = vsyncpa [#allocation3], 0
    %s12 = scalar_lea.sflag [#allocation3], 1
    %13 = vsyncpa %s12, 0
    %14 = vsyncpa [#allocation6], 0
    %15 = vsyncpa [#allocation4], 0
    %s16 = scalar_lea.sflag [#allocation4], 1
    %17 = vsyncpa %s16, 0
    %18 = vsyncpa [#allocation9], 0
    %s19 = scalar_lea.sflag [#allocation9], 1
    %20 = vsyncpa %s19, 0
    loop: start=0, step=1, limit=4
    $region2: #{tpu_custom_call.1} parent=1 // loop_pre_header
      _
    $region3: #{tpu_custom_call.1} parent=1 // loop_header
      %s22 = sphi 0, %s26
      %p23 = scmp.ge.s32.totalorder %s22, 4
      %s29 = sphi 0, %s41
      %s30 = sphi 0, %s37
      %s31 = sphi 0, %s29
      %s32 = sphi 0, %s30
      %s33 = sphi 0, %s31
      %s34 = sphi 0, %s32
      %s46 = sphi 0, %s48
      %s49 = sphi 0, %s46
      %s50 = sphi 0, %s49
      %s66 = sphi 0, %s50
      %s70 = sphi 0, %s70
      %s72 = sphi 0, %s70
      %s73 = sphi 0, %s72
      %s87 = sphi 0, %s73
      %s91 = sphi 0, %s91
      %s93 = sphi 0, %s91
      %s94 = sphi 0, %s93
      %s108 = sphi 0, %s94
      %s116 = sphi 0, %s118
      %s119 = sphi 0, %s116
      %s120 = sphi 0, %s119
      %s136 = sphi 0, %s120
      %s144 = sphi 0, %s146
      %s147 = sphi 0, %s144
      %s148 = sphi 0, %s147
      %s164 = sphi 0, %s148
      %s172 = sphi 0, %s174
      %s175 = sphi 0, %s172
      %s176 = sphi 0, %s175
      %s192 = sphi 0, %s176
    $region4: #{tpu_custom_call.1} parent=1 // loop_header_branch
      %25 = sbr.rel (%p23) target = $region8
    $region5: #{tpu_custom_call.1} parent=1 // loop_body
      %s27 = ssub.s32 %s22, 1
      %s28 = ssub.s32 %s22, 2
      %s35 = sadd.s32 1, %s30
      %p36 = scmp.ge.s32.totalorder %s35, 1
      %s37 = scalar_select %p36, 0, %s35
      %s38 = sadd.s32 1, %s29
      %s39 = scalar_select %p36, %s38, %s29
      %p40 = scmp.ge.s32.totalorder %s39, 2
      %s41 = scalar_select %p40, 0, %s39
      %s42 = ssub.s32 %s29, %s41
      %s43 = ssub.s32 %s30, %s37
      %s44 = sor.u32 %s42, %s43
      %p45 = scmp.eq.s32.totalorder %s44, 0
      %s47 = sadd.s32 %s46, 1
      %s48 = scalar_select %p45, %s46, %s47
      %p51 = pneg %p45
      %p52 = scmp.eq.s32.totalorder %s22, 1
      %p53 = por %p51, %p52
      %p54 = scmp.ne.s32.totalorder %s46, %s49
      %p55 = scmp.eq.s32.totalorder %s22, 0
      %p56 = por %p54, %p55
      %p57 = scmp.ne.s32.totalorder %s46, %s49
      %p58 = scmp.eq.s32.totalorder %s27, 1
      %p59 = por %p57, %p58
      %p60 = scmp.ne.s32.totalorder %s49, %s50
      %p61 = scmp.eq.s32.totalorder %s27, 0
      %p62 = por %p60, %p61
      %p63 = scmp.ne.s32.totalorder %s49, %s50
      %p64 = scmp.eq.s32.totalorder %s28, 1
      %p65 = por %p63, %p64
      %p67 = scmp.ne.s32.totalorder %s50, %s66
      %p68 = scmp.eq.s32.totalorder %s28, 0
      %p69 = por %p67, %p68
      %s71 = sadd.s32 %s70, 1
      %p74 = scmp.eq.s32.totalorder %s22, 1
      %p75 = scmp.ne.s32.totalorder %s70, %s72
      %p76 = scmp.eq.s32.totalorder %s22, 0
      %p77 = por %p75, %p76
      %p78 = scmp.ne.s32.totalorder %s70, %s72
      %p79 = scmp.eq.s32.totalorder %s27, 1
      %p80 = por %p78, %p79
      %p81 = scmp.ne.s32.totalorder %s72, %s73
      %p82 = scmp.eq.s32.totalorder %s27, 0
      %p83 = por %p81, %p82
      %p84 = scmp.ne.s32.totalorder %s72, %s73
      %p85 = scmp.eq.s32.totalorder %s28, 1
      %p86 = por %p84, %p85
      %p88 = scmp.ne.s32.totalorder %s73, %s87
      %p89 = scmp.eq.s32.totalorder %s28, 0
      %p90 = por %p88, %p89
      %s92 = sadd.s32 %s91, 1
      %p95 = scmp.eq.s32.totalorder %s22, 1
      %p96 = scmp.ne.s32.totalorder %s91, %s93
      %p97 = scmp.eq.s32.totalorder %s22, 0
      %p98 = por %p96, %p97
      %p99 = scmp.ne.s32.totalorder %s91, %s93
      %p100 = scmp.eq.s32.totalorder %s27, 1
      %p101 = por %p99, %p100
      %p102 = scmp.ne.s32.totalorder %s93, %s94
      %p103 = scmp.eq.s32.totalorder %s27, 0
      %p104 = por %p102, %p103
      %p105 = scmp.ne.s32.totalorder %s93, %s94
      %p106 = scmp.eq.s32.totalorder %s28, 1
      %p107 = por %p105, %p106
      %p109 = scmp.ne.s32.totalorder %s94, %s108
      %p110 = scmp.eq.s32.totalorder %s28, 0
      %p111 = por %p109, %p110
      %s112 = ssub.s32 %s29, %s41
      %s113 = ssub.s32 %s30, %s37
      %s114 = sor.u32 %s112, %s113
      %p115 = scmp.eq.s32.totalorder %s114, 0
      %s117 = sadd.s32 %s116, 1
      %s118 = scalar_select %p115, %s116, %s117
      %p121 = pneg %p115
      %p122 = scmp.eq.s32.totalorder %s22, 1
      %p123 = por %p121, %p122
      %p124 = scmp.ne.s32.totalorder %s116, %s119
      %p125 = scmp.eq.s32.totalorder %s22, 0
      %p126 = por %p124, %p125
      %p127 = scmp.ne.s32.totalorder %s116, %s119
      %p128 = scmp.eq.s32.totalorder %s27, 1
      %p129 = por %p127, %p128
      %p130 = scmp.ne.s32.totalorder %s119, %s120
      %p131 = scmp.eq.s32.totalorder %s27, 0
      %p132 = por %p130, %p131
      %p133 = scmp.ne.s32.totalorder %s119, %s120
      %p134 = scmp.eq.s32.totalorder %s28, 1
      %p135 = por %p133, %p134
      %p137 = scmp.ne.s32.totalorder %s120, %s136
      %p138 = scmp.eq.s32.totalorder %s28, 0
      %p139 = por %p137, %p138
      %s140 = ssub.s32 %s29, %s41
      %s141 = ssub.s32 %s30, %s37
      %s142 = sor.u32 %s140, %s141
      %p143 = scmp.eq.s32.totalorder %s142, 0
      %s145 = sadd.s32 %s144, 1
      %s146 = scalar_select %p143, %s144, %s145
      %p149 = pneg %p143
      %p150 = scmp.eq.s32.totalorder %s22, 1
      %p151 = por %p149, %p150
      %p152 = scmp.ne.s32.totalorder %s144, %s147
      %p153 = scmp.eq.s32.totalorder %s22, 0
      %p154 = por %p152, %p153
      %p155 = scmp.ne.s32.totalorder %s144, %s147
      %p156 = scmp.eq.s32.totalorder %s27, 1
      %p157 = por %p155, %p156
      %p158 = scmp.ne.s32.totalorder %s147, %s148
      %p159 = scmp.eq.s32.totalorder %s27, 0
      %p160 = por %p158, %p159
      %p161 = scmp.ne.s32.totalorder %s147, %s148
      %p162 = scmp.eq.s32.totalorder %s28, 1
      %p163 = por %p161, %p162
      %p165 = scmp.ne.s32.totalorder %s148, %s164
      %p166 = scmp.eq.s32.totalorder %s28, 0
      %p167 = por %p165, %p166
      %s168 = ssub.s32 %s29, %s41
      %s169 = ssub.s32 %s30, %s37
      %s170 = sor.u32 %s168, %s169
      %p171 = scmp.eq.s32.totalorder %s170, 0
      %s173 = sadd.s32 %s172, 1
      %s174 = scalar_select %p171, %s172, %s173
      %p177 = pneg %p171
      %p178 = scmp.eq.s32.totalorder %s22, 1
      %p179 = por %p177, %p178
      %p180 = scmp.ne.s32.totalorder %s172, %s175
      %p181 = scmp.eq.s32.totalorder %s22, 0
      %p182 = por %p180, %p181
      %p183 = scmp.ne.s32.totalorder %s172, %s175
      %p184 = scmp.eq.s32.totalorder %s27, 1
      %p185 = por %p183, %p184
      %p186 = scmp.ne.s32.totalorder %s175, %s176
      %p187 = scmp.eq.s32.totalorder %s27, 0
      %p188 = por %p186, %p187
      %p189 = scmp.ne.s32.totalorder %s175, %s176
      %p190 = scmp.eq.s32.totalorder %s28, 1
      %p191 = por %p189, %p190
      %p193 = scmp.ne.s32.totalorder %s176, %s192
      %p194 = scmp.eq.s32.totalorder %s28, 0
      %p195 = por %p193, %p194
      %p196 = scmp.le.s32.totalorder 1, %s22
      %p197 = scmp.lt.s32.totalorder %s22, 3
      %p198 = pnand %p196, %p197
      %p199 = pneg %p198
      // Predicated region
      $region9: #{tpu_custom_call.1} parent=5 // pred_check
        _
      $region10: #{tpu_custom_call.1} parent=5 // pred_check_branch
        %201 = sbr.rel (%p198) target = $region12
      $region11: #{tpu_custom_call.1} parent=5 // pred_region
        %s202 = ssub.s32 %s22, 1
        // Predicated region
        $region13: #{tpu_custom_call.1} parent=11 // pred_check
          %p203 = pneg %p83
        $region14: #{tpu_custom_call.1} parent=11 // pred_check_branch
          %205 = sbr.rel (%p203) target = $region16
        $region15: #{tpu_custom_call.1} parent=11 // pred_region
          %207 = vsyncadd [#allocation6], 0
          %s208 = sshll.u32 %s1, 4
          %s209 = int_to_ptr.hbm [resolvable:$true] %s208
          %s210 = sshll.u32 [#allocation5], 4
          %s211 = int_to_ptr.vmem [resolvable:$true] %s210
          %216 = dma.hbm_to_vmem [thread:$0]  %s209, 512, %s211, [#allocation6], 128, 128, 8
        $region16: #{tpu_custom_call.1} parent=11 // pred_fallthru
          _
        // Predicated region
        $region17: #{tpu_custom_call.1} parent=11 // pred_check
          %p217 = pneg %p104
        $region18: #{tpu_custom_call.1} parent=11 // pred_check_branch
          %219 = sbr.rel (%p217) target = $region20
        $region19: #{tpu_custom_call.1} parent=11 // pred_region
          _
        $region20: #{tpu_custom_call.1} parent=11 // pred_fallthru
          _
      $region12: #{tpu_custom_call.1} parent=5 // pred_fallthru
        _
      %p220 = scmp.lt.s32.totalorder %s22, 2
      // Predicated region
      $region21: #{tpu_custom_call.1} parent=5 // pred_check
        %p221 = pneg %p220
      $region22: #{tpu_custom_call.1} parent=5 // pred_check_branch
        %223 = sbr.rel (%p221) target = $region24
      $region23: #{tpu_custom_call.1} parent=5 // pred_region
        // Predicated region
        $region25: #{tpu_custom_call.1} parent=23 // pred_check
          %p224 = pneg %p56
        $region26: #{tpu_custom_call.1} parent=23 // pred_check_branch
          %226 = sbr.rel (%p224) target = $region28
        $region27: #{tpu_custom_call.1} parent=23 // pred_region
          %s227 = sand.u32 %s46, 1
          %s228 = scalar_lea.sflag [#allocation3], %s227
          %s229 = sand.u32 %s46, 1
          %s230 = smul.addr %s229, 8
          %s231 = scalar_lea.vmem [#allocation2], %s230
          %233 = vsyncadd %s228, 0
          %s234 = sadd.s32 %s30, %s29
          %s235 = smul.addr %s234, 8
          %s236 = scalar_lea.hbm %s0, %s235
          %s238 = sshll.u32 %s236, 4
          %s239 = int_to_ptr.hbm [resolvable:$true] %s238
          %s240 = sshll.u32 %s231, 4
          %s241 = int_to_ptr.vmem [resolvable:$true] %s240
          %243 = dma.hbm_to_vmem [thread:$0]  %s239, 128, %s241, %s228
        $region28: #{tpu_custom_call.1} parent=23 // pred_fallthru
          _
      $region24: #{tpu_custom_call.1} parent=5 // pred_fallthru
        _
      %p244 = scmp.le.s32.totalorder 1, %s22
      %p245 = scmp.lt.s32.totalorder %s22, 3
      %p246 = pnand %p244, %p245
      %p247 = pneg %p246
      // Predicated region
      $region29: #{tpu_custom_call.1} parent=5 // pred_check
        _
      $region30: #{tpu_custom_call.1} parent=5 // pred_check_branch
        %249 = sbr.rel (%p246) target = $region32
      $region31: #{tpu_custom_call.1} parent=5 // pred_region
        %s250 = ssub.s32 %s22, 1
        %s251 = sand.u32 %s49, 1
        %s252 = scalar_lea.sflag [#allocation3], %s251
        %s253 = sand.u32 %s49, 1
        %s254 = smul.addr %s253, 8
        %s255 = scalar_lea.vmem [#allocation2], %s254
        // Predicated region
        $region33: #{tpu_custom_call.1} parent=31 // pred_check
          %p256 = pneg %p62
        $region34: #{tpu_custom_call.1} parent=31 // pred_check_branch
          %258 = sbr.rel (%p256) target = $region36
        $region35: #{tpu_custom_call.1} parent=31 // pred_region
          %260 = dma.done %s252, 128
        $region36: #{tpu_custom_call.1} parent=31 // pred_fallthru
          _
        // Predicated region
        $region37: #{tpu_custom_call.1} parent=31 // pred_check
          %p261 = pneg %p83
        $region38: #{tpu_custom_call.1} parent=31 // pred_check_branch
          %263 = sbr.rel (%p261) target = $region40
        $region39: #{tpu_custom_call.1} parent=31 // pred_region
          %265 = dma.done [#allocation6], 512
        $region40: #{tpu_custom_call.1} parent=31 // pred_fallthru
          _
        %s266 = sand.u32 %s49, 1
        %s267 = scalar_lea.sflag [#allocation3], %s266
        %s268 = sand.u32 %s49, 1
        %s269 = smul.addr %s268, 8
        %s270 = scalar_lea.vmem [#allocation2], %s269
        %p271 = pneg %p62
        %p272 = pneg %p59
        %p273 = pneg %p83
        %p274 = pneg %p80
        %p275 = pneg %p104
        %p276 = pneg %p101
        %p277 = pneg %p132
        %p278 = pneg %p129
        %s279 = sand.u32 %s119, 1
        %s280 = scalar_lea.sflag [#allocation4], %s279
        %s281 = sand.u32 %s119, 1
        %s282 = smul.addr %s281, 8
        %s283 = scalar_lea.vmem [#allocation7], %s282
        %p284 = pneg %p160
        %p285 = pneg %p157
        %s286 = sand.u32 %s27, 1
        %s287 = scalar_lea.sflag [#allocation9], %s286
        %s288 = sand.u32 %s147, 1
        %s289 = smul.addr %s288, 32
        %s290 = scalar_lea.vmem [#allocation8], %s289
        %p291 = pneg %p188
        %p292 = pneg %p185
        %s293 = sand.u32 %s27, 1
        %s294 = scalar_lea.sflag [#allocation9], %s293
        %s295 = sand.u32 %s175, 1
        %s296 = smul.addr %s295, 32
        %s297 = scalar_lea.vmem [#allocation10], %s296
        %v298 = vld [vmem:[%s255] sm:$0xff]
        %v299 = vld [vmem:[#allocation5] sm:$0xff]
        %v300 = vld [vmem:[#allocation5 + $0x8] sm:$0xff]
        %v301 = vld [vmem:[#allocation5 + $0x10] sm:$0xff]
        %v302 = vld [vmem:[#allocation5 + $0x18] sm:$0xff]
        %v303 = vld [vmem:[%s2] sm:$0x1]
        %v305 = vperm.slane %v303, 0
        %vm307 = vcmask 261120
        %v309 = vsel %vm307, %v298, 0
        %311 = vmatpush.msra.mxu0 0.0
        %312 = vmatpush.msra.mxu0 0.0
        %313 = vmatpush.msra.mxu0 0.0
        %314 = vmatpush.msra.mxu0 0.0
        %315 = vmatpush.msra.mxu0 0.0
        %316 = vmatpush.msra.mxu0 0.0
        %317 = vmatpush.msra.mxu0 0.0
        %318 = vmatpush.msra.mxu0 0.0
        %319 = vmatpush.msra.mxu0 0.0
        %320 = vmatpush.msra.mxu0 0.0
        %321 = vmatpush.msra.mxu0 0.0
        %322 = vmatpush.msra.mxu0 0.0
        %323 = vmatpush.msra.mxu0 %v302
        %324 = vmatpush.msra.mxu0 %v301
        %325 = vmatpush.msra.mxu0 %v300
        %326 = vmatpush.msra.mxu0 %v299
        %327 = vmatmul.f32.gmra.mxu0 %v309
        %v328 = vpop.f32.mrf.mxu0
        %v329 = vadd.f32 %v305, %v328
        %330 = vdwg.mxu0
        %331 = vst.msk [vmem:[%s283] sm:$0xff] %vm307, %v329
        %333 = vrot.lane.b32.xlu0 %v329, 96
        %v334 = vpop.permute.xlu0 %333
        %vm336 = vcmask 64512
        %337 = vst.msk [vmem:[%s290] sm:$0xff] %vm336, %v334
        %338 = vrot.lane.b32.xlu0 %v329, 88
        %v339 = vpop.permute.xlu0 %338
        %s341 = scalar_lea.vmem %s290, 8 [#allocation8]
        %342 = vst.msk [vmem:[%s341] sm:$0xff] %vm336, %v339
        %343 = vrot.lane.b32.xlu0 %v329, 80
        %v344 = vpop.permute.xlu0 %343
        %s346 = scalar_lea.vmem %s290, 16 [#allocation8]
        %347 = vst.msk [vmem:[%s346] sm:$0xff] %vm336, %v344
        %348 = vrot.lane.b32.xlu0 %v329, 72
        %v349 = vpop.permute.xlu0 %348
        %s351 = scalar_lea.vmem %s290, 24 [#allocation8]
        %352 = vst.msk [vmem:[%s351] sm:$0xff] %vm336, %v349
        %353 = vrot.lane.b32.xlu0 %v329, 64
        %v354 = vpop.permute.xlu0 %353
        %356 = vst.msk [vmem:[%s297] sm:$0xff] %vm336, %v354
        %357 = vrot.lane.b32.xlu0 %v329, 56
        %v358 = vpop.permute.xlu0 %357
        %s360 = scalar_lea.vmem %s297, 8 [#allocation10]
        %361 = vst.msk [vmem:[%s360] sm:$0xff] %vm336, %v358
        %362 = vrot.lane.b32.xlu0 %v329, 48
        %v363 = vpop.permute.xlu0 %362
        %s365 = scalar_lea.vmem %s297, 16 [#allocation10]
        %366 = vst.msk [vmem:[%s365] sm:$0xff] %vm336, %v363
        %367 = vrot.lane.b32.xlu0 %v329, 40
        %v368 = vpop.permute.xlu0 %367
        %s370 = scalar_lea.vmem %s297, 24 [#allocation10]
        %371 = vst.msk [vmem:[%s370] sm:$0xff] %vm336, %v368
        %s372 = sand.u32 %s119, 1
        %s373 = scalar_lea.sflag [#allocation4], %s372
        %s374 = sand.u32 %s119, 1
        %s375 = smul.addr %s374, 8
        %s376 = scalar_lea.vmem [#allocation7], %s375
        %s377 = sand.u32 %s27, 1
        %s378 = scalar_lea.sflag [#allocation9], %s377
        %s379 = sand.u32 %s147, 1
        %s380 = smul.addr %s379, 32
        %s381 = scalar_lea.vmem [#allocation8], %s380
        %s382 = sand.u32 %s27, 1
        %s383 = scalar_lea.sflag [#allocation9], %s382
        %s384 = sand.u32 %s175, 1
        %s385 = smul.addr %s384, 32
        %s386 = scalar_lea.vmem [#allocation10], %s385
        // Predicated region
        $region41: #{tpu_custom_call.1} parent=31 // pred_check
          %p387 = pneg %p129
        $region42: #{tpu_custom_call.1} parent=31 // pred_check_branch
          %389 = sbr.rel (%p387) target = $region44
        $region43: #{tpu_custom_call.1} parent=31 // pred_region
          %391 = vsyncadd %s373, 0
          %s392 = sadd.s32 %s32, %s31
          %s393 = smul.addr %s392, 8
          %s394 = scalar_lea.hbm %s3, %s393
          %s396 = sshll.u32 %s376, 4
          %s397 = int_to_ptr.vmem [resolvable:$true] %s396
          %s398 = sshll.u32 %s394, 4
          %s399 = int_to_ptr.hbm [resolvable:$true] %s398
          %401 = dma.vmem_to_hbm [thread:$0]  %s397, 128, %s399, %s373
        $region44: #{tpu_custom_call.1} parent=31 // pred_fallthru
          _
        // Predicated region
        $region45: #{tpu_custom_call.1} parent=31 // pred_check
          %p402 = pneg %p157
        $region46: #{tpu_custom_call.1} parent=31 // pred_check_branch
          %404 = sbr.rel (%p402) target = $region48
        $region47: #{tpu_custom_call.1} parent=31 // pred_region
          %406 = vsyncadd %s378, 0
          %s407 = smul.addr %s31, 4
          %s408 = sadd.s32 %s32, %s407
          %s409 = smul.addr %s408, 8
          %s410 = scalar_lea.hbm %s4, %s409
          %s411 = sshll.u32 %s381, 4
          %s412 = int_to_ptr.vmem [resolvable:$true] %s411
          %s413 = sshll.u32 %s410, 4
          %s414 = int_to_ptr.hbm [resolvable:$true] %s413
          %419 = dma.vmem_to_hbm [thread:$0]  %s412, 512, %s414, %s378, 128, 128, 8
        $region48: #{tpu_custom_call.1} parent=31 // pred_fallthru
          _
        // Predicated region
        $region49: #{tpu_custom_call.1} parent=31 // pred_check
          %p420 = pneg %p185
        $region50: #{tpu_custom_call.1} parent=31 // pred_check_branch
          %422 = sbr.rel (%p420) target = $region52
        $region51: #{tpu_custom_call.1} parent=31 // pred_region
          %424 = vsyncadd %s383, 0
          %s425 = smul.addr %s31, 4
          %s426 = sadd.s32 %s32, %s425
          %s427 = smul.addr %s426, 8
          %s428 = scalar_lea.hbm %s5, %s427
          %s429 = sshll.u32 %s386, 4
          %s430 = int_to_ptr.vmem [resolvable:$true] %s429
          %s431 = sshll.u32 %s428, 4
          %s432 = int_to_ptr.hbm [resolvable:$true] %s431
          %437 = dma.vmem_to_hbm [thread:$0]  %s430, 512, %s432, %s383, 128, 128, 8
        $region52: #{tpu_custom_call.1} parent=31 // pred_fallthru
          _
      $region32: #{tpu_custom_call.1} parent=5 // pred_fallthru
        _
      %p438 = scmp.le.s32.totalorder 2, %s22
      // Predicated region
      $region53: #{tpu_custom_call.1} parent=5 // pred_check
        %p439 = pneg %p438
      $region54: #{tpu_custom_call.1} parent=5 // pred_check_branch
        %441 = sbr.rel (%p439) target = $region56
      $region55: #{tpu_custom_call.1} parent=5 // pred_region
        %s442 = ssub.s32 %s22, 2
        // Predicated region
        $region57: #{tpu_custom_call.1} parent=55 // pred_check
          %p443 = pneg %p135
        $region58: #{tpu_custom_call.1} parent=55 // pred_check_branch
          %445 = sbr.rel (%p443) target = $region60
        $region59: #{tpu_custom_call.1} parent=55 // pred_region
          %s446 = sand.u32 %s120, 1
          %s447 = scalar_lea.sflag [#allocation4], %s446
          %s448 = sand.u32 %s120, 1
          %s449 = smul.addr %s448, 8
          %s450 = scalar_lea.vmem [#allocation7], %s449
          %452 = dma.done %s447, 128
        $region60: #{tpu_custom_call.1} parent=55 // pred_fallthru
          _
        // Predicated region
        $region61: #{tpu_custom_call.1} parent=55 // pred_check
          %p453 = pneg %p163
        $region62: #{tpu_custom_call.1} parent=55 // pred_check_branch
          %455 = sbr.rel (%p453) target = $region64
        $region63: #{tpu_custom_call.1} parent=55 // pred_region
          %s456 = sand.u32 %s28, 1
          %s457 = scalar_lea.sflag [#allocation9], %s456
          %s458 = sand.u32 %s148, 1
          %s459 = smul.addr %s458, 32
          %s460 = scalar_lea.vmem [#allocation8], %s459
          %462 = dma.done %s457, 512
        $region64: #{tpu_custom_call.1} parent=55 // pred_fallthru
          _
        // Predicated region
        $region65: #{tpu_custom_call.1} parent=55 // pred_check
          %p463 = pneg %p191
        $region66: #{tpu_custom_call.1} parent=55 // pred_check_branch
          %465 = sbr.rel (%p463) target = $region68
        $region67: #{tpu_custom_call.1} parent=55 // pred_region
          %s466 = sand.u32 %s28, 1
          %s467 = scalar_lea.sflag [#allocation9], %s466
          %s468 = sand.u32 %s176, 1
          %s469 = smul.addr %s468, 32
          %s470 = scalar_lea.vmem [#allocation10], %s469
          %472 = dma.done %s467, 512
        $region68: #{tpu_custom_call.1} parent=55 // pred_fallthru
          _
      $region56: #{tpu_custom_call.1} parent=5 // pred_fallthru
        _
    $region6: #{tpu_custom_call.1} parent=1 // loop_footer
      %s26 = sadd.s32 1, %s22
    $region7: #{tpu_custom_call.1} parent=1 // loop_footer_branch
      %21 = sbr.rel target = $region3
    $region8: #{tpu_custom_call.1} parent=1 // loop_exit
      _
    %473 = vsyncpa [#allocation3], 1
    %s474 = scalar_lea.sflag [#allocation3], 1
    %475 = vsyncpa %s474, 1
    %476 = vsyncpa [#allocation6], 1
    %477 = vsyncpa [#allocation4], 1
    %s478 = scalar_lea.sflag [#allocation4], 1
    %479 = vsyncpa %s478, 1
    %480 = vsyncpa [#allocation9], 1
    %s481 = scalar_lea.sflag [#allocation9], 1
    %482 = vsyncpa %s481, 1

</llo_original>
